<compile_context>
chip_gen: v5e
topology: v5e:2x2
jax: 0.10.0
libtpu: 0.0.40
codegen_flags: <defaults>
</compile_context>

<pallas_src>
import jax
import jax.numpy as jnp
from jax.experimental import pallas as pl
from jax.experimental.pallas import tpu as pltpu


def deepnet_kernel(x_ref,
                   w1_ref, b1_ref,
                   w2_ref, b2_ref,
                   w3_ref, b3_ref,
                   w4_ref, b4_ref,
                   o_ref):
    # Stream x in bf16; accumulate every matmul in f32 on the MXU.
    x = x_ref[...].astype(jnp.bfloat16)

    # layer1 + ReLU
    h = jnp.dot(x, w1_ref[...], preferred_element_type=jnp.float32) + b1_ref[...]
    h = jnp.maximum(h, 0.0)

    # dropout1 (p=0.5) -> identity in eval mode

    # layer2 + ReLU
    h = jnp.dot(h.astype(jnp.bfloat16), w2_ref[...],
                preferred_element_type=jnp.float32) + b2_ref[...]
    h = jnp.maximum(h, 0.0)

    # layer3 + ReLU
    h = jnp.dot(h.astype(jnp.bfloat16), w3_ref[...],
                preferred_element_type=jnp.float32) + b3_ref[...]
    h = jnp.maximum(h, 0.0)

    # output layer (60 -> 1) on the VPU/XLU: broadcast w4 row, multiply,
    # lane-reduce.  Avoids an almost-empty MXU tile + result-FIFO drain.
    z = jnp.sum(h * w4_ref[...], axis=-1, keepdims=True) + b4_ref[...]   # (TB, 1)

    # sigmoid on the EUP, then XLU-transpose to a lane-dense (1, TB) row so the
    # writeback is a few full-width stores + one contiguous DMA row.
    o_ref[0] = jnp.transpose(jax.nn.sigmoid(z))                          # (1, TB)


def _round_up(a, b):
    return ((a + b - 1) // b) * b


def _choose_tiling(B, tb):
    """Pick batch tile TB (multiple of 8) and tile count.

    - Large tiles amortize the ~0.35 us/grid-step pipeline overhead.
    - For B >= 16, guarantee >= 2 tiles (and prefer an even count) so the
      "parallel" batch axis spans both v7x TensorCores with balanced work.
    """
    if B < 16:
        return _round_up(max(B, 1), 8), 1
    TB = max(8, min(tb, _round_up(pl.cdiv(B, 2), 8)))
    num_tiles = pl.cdiv(B, TB)
    if num_tiles > 2 and num_tiles % 2 == 1:
        # Prefer an even tile count so neither v7x core gets a straggler tile.
        TB = max(8, _round_up(pl.cdiv(B, num_tiles + 1), 8))
        num_tiles = pl.cdiv(B, TB)
    return TB, num_tiles


def deepnet_forward(x, params, *, tb=2048):
    """Fused DeepNet forward.  Weights pre-transposed: (in, out); biases (1, out)."""
    (w1, b1, w2, b2, w3, b3, w4, b4) = params
    assert x.ndim == 2 and x.shape[1] == 14, x.shape
    assert w1.shape == (14, 512) and b1.shape == (1, 512)
    assert w2.shape == (512, 256) and b2.shape == (1, 256)
    assert w3.shape == (256, 60) and b3.shape == (1, 60)
    assert w4.shape == (60, 1) and b4.shape == (1, 1)

    B = x.shape[0]
    x = x.astype(jnp.float32)

    # bf16 weights for the MXU layers; f32 for the tiny VPU output layer.
    w1b = w1.astype(jnp.bfloat16)
    w2b = w2.astype(jnp.bfloat16)
    w3b = w3.astype(jnp.bfloat16)
    w4_row = jnp.transpose(w4).astype(jnp.float32)          # (1, 60)
    b1f, b2f, b3f, b4f = (b.astype(jnp.float32) for b in (b1, b2, b3, b4))

    TB, num_tiles = _choose_tiling(B, tb)
    rows = num_tiles * TB

    flops = 2 * rows * (14 * 512 + 512 * 256 + 256 * 60 + 60)
    transcendentals = 2 * rows                               # sigmoid: exp + reciprocal
    bytes_accessed = (
        B * 14 * 4                                           # x stream (f32)
        + (w1b.size + w2b.size + w3b.size) * 2               # bf16 weights
        + (w4_row.size + b1f.size + b2f.size + b3f.size + b4f.size) * 4
        + rows * 4                                           # output slab
    )

    resident = lambda i: (0, 0)   # weights/biases stay in VMEM across all tiles
    # NOTE: pipeline_mode=pl.Buffered(1) on the resident operands would save
    # ~0.3 MiB of never-used second buffers (only relevant near v7x's 64 MiB
    # ceiling at very large TB); skipped as negligible here.

    out = pl.pallas_call(
        deepnet_kernel,
        out_shape=jax.ShapeDtypeStruct((num_tiles, 1, TB), jnp.float32),
        grid=(num_tiles,),
        in_specs=[
            pl.BlockSpec((TB, 14), lambda i: (i, 0)),        # x: tiled over batch,
                                                             # ragged last tile padded by Pallas
            pl.BlockSpec((14, 512), resident),
            pl.BlockSpec((1, 512), resident),
            pl.BlockSpec((512, 256), resident),
            pl.BlockSpec((1, 256), resident),
            pl.BlockSpec((256, 60), resident),
            pl.BlockSpec((1, 60), resident),
            pl.BlockSpec((1, 60), resident),                 # w4 as (1, 60) row
            pl.BlockSpec((1, 1), resident),
        ],
        out_specs=pl.BlockSpec((1, 1, TB), lambda i: (i, 0, 0)),  # lane-dense row per tile
        compiler_params=pltpu.CompilerParams(
            dimension_semantics=("parallel",),               # megacore batch split (v7x)
            vmem_limit_bytes=48 * 1024 * 1024,               # < v7x 64 MiB, ample for TB<=4096
        ),
        cost_estimate=pl.CostEstimate(
            flops=flops,
            transcendentals=transcendentals,
            bytes_accessed=bytes_accessed,
        ),
    )(x, w1b, b1f, w2b, b2f, w3b, b3f, w4_row, b4f)

    # (num_tiles, 1, TB) -> flat -> (B, 1); only the tiny output gets sliced.
    return out.reshape(-1)[:B].reshape(B, 1)


def init_params(key):
    """Deterministic init mimicking PyTorch's U(-1/sqrt(fan_in), 1/sqrt(fan_in))."""
    sizes = [(14, 512), (512, 256), (256, 60), (60, 1)]
    params = []
    for fan_in, fan_out in sizes:
        kw, kb, key = jax.random.split(key, 3)
        bound = 1.0 / (fan_in ** 0.5)
        w = jax.random.uniform(kw, (fan_in, fan_out), jnp.float32, -bound, bound)
        b = jax.random.uniform(kb, (1, fan_out), jnp.float32, -bound, bound)
        params.extend([w, b])
    return tuple(params)


def reference_forward_bf16(x, params):
    """Pure-JAX reference using the kernel's numerics (bf16 operands, f32 accum)."""
    (w1, b1, w2, b2, w3, b3, w4, b4) = params
    bf = jnp.bfloat16
    h = jnp.dot(x.astype(bf), w1.astype(bf), preferred_element_type=jnp.float32) + b1
    h = jnp.maximum(h, 0.0)
    h = jnp.dot(h.astype(bf), w2.astype(bf), preferred_element_type=jnp.float32) + b2
    h = jnp.maximum(h, 0.0)
    h = jnp.dot(h.astype(bf), w3.astype(bf), preferred_element_type=jnp.float32) + b3
    h = jnp.maximum(h, 0.0)
    z = jnp.dot(h, w4) + b4
    return jax.nn.sigmoid(z)


def reference_forward_f32(x, params):
    """Pure-f32 reference matching the torch module exactly (eval mode)."""
    (w1, b1, w2, b2, w3, b3, w4, b4) = params
    h = jnp.maximum(jnp.dot(x, w1) + b1, 0.0)
    h = jnp.maximum(jnp.dot(h, w2) + b2, 0.0)
    h = jnp.maximum(jnp.dot(h, w3) + b3, 0.0)
    return jax.nn.sigmoid(jnp.dot(h, w4) + b4)


if __name__ == "__main__":
    key = jax.random.PRNGKey(0)
    k_x, k_x2, k_p = jax.random.split(key, 3)
    params = init_params(k_p)

    # Small batch: single tile.
    x_small = jax.random.normal(k_x, (8, 14), dtype=jnp.float32)
    out_small = jax.block_until_ready(deepnet_forward(x_small, params))
    assert out_small.shape == (8, 1)
    assert jnp.allclose(out_small, reference_forward_bf16(x_small, params),
                        atol=2e-3, rtol=2e-3)
    assert jnp.allclose(out_small, reference_forward_f32(x_small, params), atol=5e-2)

    # Larger, non-multiple batch: >=2 tiles (v7x megacore path) + ragged last
    # x tile (padded reads) + lane-dense output slab + final slice.
    x_big = jax.random.normal(k_x2, (1000, 14), dtype=jnp.float32)
    out_big = jax.block_until_ready(deepnet_forward(x_big, params))
    assert out_big.shape == (1000, 1)
    assert jnp.allclose(out_big, reference_forward_bf16(x_big, params),
                        atol=2e-3, rtol=2e-3)
    assert jnp.allclose(out_big, reference_forward_f32(x_big, params), atol=5e-2)

    print("KERNEL_OK")
</pallas_src>

<mosaic_0001>
module attributes {stable_mosaic.version = 11 : i64} {
  func.func @deepnet_kernel(%arg0: i32, %arg1: memref<8x14xf32, #tpu.memory_space<vmem>>, %arg2: memref<14x512xbf16, #tpu.memory_space<vmem>>, %arg3: memref<1x512xf32, #tpu.memory_space<vmem>>, %arg4: memref<512x256xbf16, #tpu.memory_space<vmem>>, %arg5: memref<1x256xf32, #tpu.memory_space<vmem>>, %arg6: memref<256x60xbf16, #tpu.memory_space<vmem>>, %arg7: memref<1x60xf32, #tpu.memory_space<vmem>>, %arg8: memref<1x60xf32, #tpu.memory_space<vmem>>, %arg9: memref<1x1xf32, #tpu.memory_space<vmem>>, %arg10: memref<1x1x8xf32, #tpu.memory_space<vmem>>) attributes {dimension_semantics = [#tpu.dimension_semantics<parallel>], iteration_bounds = array<i64: 1>, scalar_prefetch = 0 : i64, scratch_operands = 0 : i64, tpu.core_type = #tpu.core_type<tc>, window_params = [{transform_indices = @transform_0, window_bounds = array<i64: 8, 14>}, {pipeline_mode = #tpu.pipeline_mode<synchronous>, transform_indices = @transform_1, window_bounds = array<i64: 14, 512>}, {pipeline_mode = #tpu.pipeline_mode<synchronous>, transform_indices = @transform_2, window_bounds = array<i64: 1, 512>}, {pipeline_mode = #tpu.pipeline_mode<synchronous>, transform_indices = @transform_3, window_bounds = array<i64: 512, 256>}, {pipeline_mode = #tpu.pipeline_mode<synchronous>, transform_indices = @transform_4, window_bounds = array<i64: 1, 256>}, {pipeline_mode = #tpu.pipeline_mode<synchronous>, transform_indices = @transform_5, window_bounds = array<i64: 256, 60>}, {pipeline_mode = #tpu.pipeline_mode<synchronous>, transform_indices = @transform_6, window_bounds = array<i64: 1, 60>}, {pipeline_mode = #tpu.pipeline_mode<synchronous>, transform_indices = @transform_7, window_bounds = array<i64: 1, 60>}, {pipeline_mode = #tpu.pipeline_mode<synchronous>, transform_indices = @transform_8, window_bounds = array<i64: 1, 1>}, {transform_indices = @transform_9, window_bounds = array<i64: 1, 1, 8>}]} {
    %c0 = arith.constant 0 : index
    %c0_0 = arith.constant 0 : index
    %0 = vector.load %arg1[%c0, %c0_0] : memref<8x14xf32, #tpu.memory_space<vmem>>, vector<8x14xf32>
    %1 = arith.truncf %0 : vector<8x14xf32> to vector<8x14xbf16>
    %c0_1 = arith.constant 0 : index
    %c0_2 = arith.constant 0 : index
    %2 = vector.load %arg2[%c0_1, %c0_2] : memref<14x512xbf16, #tpu.memory_space<vmem>>, vector<14x512xbf16>
    %cst = arith.constant dense<0.000000e+00> : vector<8x512xf32>
    %3 = tpu.matmul %1, %2, %cst {dimension_numbers = #tpu.dot_dimension_numbers<[1], [0], [0], [1], [0, 0, 1, 1], [], []>} : vector<8x14xbf16>, vector<14x512xbf16>, vector<8x512xf32> -> vector<8x512xf32>
    %c0_3 = arith.constant 0 : index
    %c0_4 = arith.constant 0 : index
    %4 = vector.load %arg3[%c0_3, %c0_4] : memref<1x512xf32, #tpu.memory_space<vmem>>, vector<1x512xf32>
    %5 = vector.broadcast %4 : vector<1x512xf32> to vector<8x512xf32>
    %6 = arith.addf %3, %5 : vector<8x512xf32>
    %cst_5 = arith.constant 0.000000e+00 : f32
    %7 = vector.broadcast %cst_5 : f32 to vector<8x512xf32>
    %8 = arith.maximumf %6, %7 : vector<8x512xf32>
    %9 = arith.truncf %8 : vector<8x512xf32> to vector<8x512xbf16>
    %c0_6 = arith.constant 0 : index
    %c0_7 = arith.constant 0 : index
    %10 = vector.load %arg4[%c0_6, %c0_7] : memref<512x256xbf16, #tpu.memory_space<vmem>>, vector<512x256xbf16>
    %cst_8 = arith.constant dense<0.000000e+00> : vector<8x256xf32>
    %11 = tpu.matmul %9, %10, %cst_8 {dimension_numbers = #tpu.dot_dimension_numbers<[1], [0], [0], [1], [0, 0, 1, 1], [], []>} : vector<8x512xbf16>, vector<512x256xbf16>, vector<8x256xf32> -> vector<8x256xf32>
    %c0_9 = arith.constant 0 : index
    %c0_10 = arith.constant 0 : index
    %12 = vector.load %arg5[%c0_9, %c0_10] : memref<1x256xf32, #tpu.memory_space<vmem>>, vector<1x256xf32>
    %13 = vector.broadcast %12 : vector<1x256xf32> to vector<8x256xf32>
    %14 = arith.addf %11, %13 : vector<8x256xf32>
    %cst_11 = arith.constant 0.000000e+00 : f32
    %15 = vector.broadcast %cst_11 : f32 to vector<8x256xf32>
    %16 = arith.maximumf %14, %15 : vector<8x256xf32>
    %17 = arith.truncf %16 : vector<8x256xf32> to vector<8x256xbf16>
    %c0_12 = arith.constant 0 : index
    %c0_13 = arith.constant 0 : index
    %18 = vector.load %arg6[%c0_12, %c0_13] : memref<256x60xbf16, #tpu.memory_space<vmem>>, vector<256x60xbf16>
    %cst_14 = arith.constant dense<0.000000e+00> : vector<8x60xf32>
    %19 = tpu.matmul %17, %18, %cst_14 {dimension_numbers = #tpu.dot_dimension_numbers<[1], [0], [0], [1], [0, 0, 1, 1], [], []>} : vector<8x256xbf16>, vector<256x60xbf16>, vector<8x60xf32> -> vector<8x60xf32>
    %c0_15 = arith.constant 0 : index
    %c0_16 = arith.constant 0 : index
    %20 = vector.load %arg7[%c0_15, %c0_16] : memref<1x60xf32, #tpu.memory_space<vmem>>, vector<1x60xf32>
    %21 = vector.broadcast %20 : vector<1x60xf32> to vector<8x60xf32>
    %22 = arith.addf %19, %21 : vector<8x60xf32>
    %cst_17 = arith.constant 0.000000e+00 : f32
    %23 = vector.broadcast %cst_17 : f32 to vector<8x60xf32>
    %24 = arith.maximumf %22, %23 : vector<8x60xf32>
    %c0_18 = arith.constant 0 : index
    %c0_19 = arith.constant 0 : index
    %25 = vector.load %arg8[%c0_18, %c0_19] : memref<1x60xf32, #tpu.memory_space<vmem>>, vector<1x60xf32>
    %26 = vector.broadcast %25 : vector<1x60xf32> to vector<8x60xf32>
    %27 = arith.mulf %24, %26 : vector<8x60xf32>
    %cst_20 = arith.constant dense<0.000000e+00> : vector<8xf32>
    %28 = vector.multi_reduction <add>, %27, %cst_20 [1] : vector<8x60xf32> to vector<8xf32>
    %29 = vector.shape_cast %28 : vector<8xf32> to vector<8x1xf32>
    %c0_21 = arith.constant 0 : index
    %c0_22 = arith.constant 0 : index
    %30 = vector.load %arg9[%c0_21, %c0_22] : memref<1x1xf32, #tpu.memory_space<vmem>>, vector<1x1xf32>
    %31 = vector.broadcast %30 : vector<1x1xf32> to vector<8x1xf32>
    %32 = arith.addf %29, %31 : vector<8x1xf32>
    %33 = arith.negf %32 : vector<8x1xf32>
    %34 = math.exp %33 : vector<8x1xf32>
    %cst_23 = arith.constant 1.000000e+00 : f32
    %35 = vector.broadcast %cst_23 : f32 to vector<8x1xf32>
    %36 = arith.addf %35, %34 : vector<8x1xf32>
    %37 = arith.divf %35, %36 : vector<8x1xf32>
    %38 = tpu.transpose %37, [1, 0] : vector<8x1xf32> -> vector<1x8xf32>
    %c0_24 = arith.constant 0 : index
    %c0_25 = arith.constant 0 : index
    %c0_26 = arith.constant 0 : index
    %39 = vector.load %arg10[%c0_24, %c0_25, %c0_26] : memref<1x1x8xf32, #tpu.memory_space<vmem>>, vector<1x1x8xf32>
    %40 = vector.shape_cast %39 : vector<1x1x8xf32> to vector<1x8xf32>
    %41 = vector.shape_cast %38 : vector<1x8xf32> to vector<1x1x8xf32>
    tpu.vector_store %arg10[%c0_24, %c0_25, %c0_26], %41 {strides = array<i32>} : memref<1x1x8xf32, #tpu.memory_space<vmem>>, vector<1x1x8xf32>,
    return
  }
  func.func @transform_0(%arg0: i32) -> (i32, i32) {
    %c0_i32 = arith.constant 0 : i32
    %c0_i32_0 = arith.constant 0 : i32
    return %arg0, %c0_i32 : i32, i32
  }
  func.func @transform_1(%arg0: i32) -> (i32, i32) {
    %c0_i32 = arith.constant 0 : i32
    %c0_i32_0 = arith.constant 0 : i32
    %c0_i32_1 = arith.constant 0 : i32
    return %c0_i32, %c0_i32_0 : i32, i32
  }
  func.func @transform_2(%arg0: i32) -> (i32, i32) {
    %c0_i32 = arith.constant 0 : i32
    %c0_i32_0 = arith.constant 0 : i32
    %c0_i32_1 = arith.constant 0 : i32
    return %c0_i32, %c0_i32_0 : i32, i32
  }
  func.func @transform_3(%arg0: i32) -> (i32, i32) {
    %c0_i32 = arith.constant 0 : i32
    %c0_i32_0 = arith.constant 0 : i32
    %c0_i32_1 = arith.constant 0 : i32
    return %c0_i32, %c0_i32_0 : i32, i32
  }
  func.func @transform_4(%arg0: i32) -> (i32, i32) {
    %c0_i32 = arith.constant 0 : i32
    %c0_i32_0 = arith.constant 0 : i32
    %c0_i32_1 = arith.constant 0 : i32
    return %c0_i32, %c0_i32_0 : i32, i32
  }
  func.func @transform_5(%arg0: i32) -> (i32, i32) {
    %c0_i32 = arith.constant 0 : i32
    %c0_i32_0 = arith.constant 0 : i32
    %c0_i32_1 = arith.constant 0 : i32
    return %c0_i32, %c0_i32_0 : i32, i32
  }
  func.func @transform_6(%arg0: i32) -> (i32, i32) {
    %c0_i32 = arith.constant 0 : i32
    %c0_i32_0 = arith.constant 0 : i32
    %c0_i32_1 = arith.constant 0 : i32
    return %c0_i32, %c0_i32_0 : i32, i32
  }
  func.func @transform_7(%arg0: i32) -> (i32, i32) {
    %c0_i32 = arith.constant 0 : i32
    %c0_i32_0 = arith.constant 0 : i32
    %c0_i32_1 = arith.constant 0 : i32
    return %c0_i32, %c0_i32_0 : i32, i32
  }
  func.func @transform_8(%arg0: i32) -> (i32, i32) {
    %c0_i32 = arith.constant 0 : i32
    %c0_i32_0 = arith.constant 0 : i32
    %c0_i32_1 = arith.constant 0 : i32
    return %c0_i32, %c0_i32_0 : i32, i32
  }
  func.func @transform_9(%arg0: i32) -> (i32, i32, i32) {
    %c0_i32 = arith.constant 0 : i32
    %c0_i32_0 = arith.constant 0 : i32
    %c0_i32_1 = arith.constant 0 : i32
    return %arg0, %c0_i32, %c0_i32_0 : i32, i32, i32
  }
}

</mosaic_0001>

<llo_original>
// kernel: tpu_custom_call.1
$region0: #{tpu_custom_call.1}
  #allocation0 [shape = 'u32[]', space=smem, size = 0x4, offset = 0x4, fixed_abs, tag = 'smem constant byte address 0x4 - core index']
  #allocation1 [shape = 'u32[72,128]{1,0:T(1,128)}', space=vmem, size = 0x9000, scoped, tag = 'internal scratch']
  #allocation2 [shape = 'f32[1,1]{1,0:T(1,128)S(1)}', space=vmem, size = 0x200, scoped, tag = 'scoped memory for tpu_custom_call.1']
  %s0 = inlined_call_operand.vmem [shape: f32[8,14], index: 0, kind: input, shape index: {}]
  %s1 = inlined_call_operand.vmem [shape: bf16[14,512], index: 1, kind: input, shape index: {}]
  %s2 = inlined_call_operand.vmem [shape: f32[1,512], index: 2, kind: input, shape index: {}]
  %s3 = inlined_call_operand.hbm [shape: bf16[512,256], index: 3, kind: input, shape index: {}]
  %s4 = inlined_call_operand.vmem [shape: f32[1,256], index: 4, kind: input, shape index: {}]
  %s5 = inlined_call_operand.vmem [shape: bf16[256,60], index: 5, kind: input, shape index: {}]
  %s6 = inlined_call_operand.vmem [shape: f32[1,60], index: 6, kind: input, shape index: {}]
  %s7 = inlined_call_operand.vmem [shape: f32[1,60], index: 7, kind: input, shape index: {}]
  %s8 = inlined_call_operand.<no memory space> [shape: f32[1,1], index: 8, kind: input, shape index: {}]
  %s9 = inlined_call_operand.hbm [shape: f32[1,1,8], index: 9, kind: output, shape index: {}]
  %s10 = sld [smem:[#allocation0]]
  $region50: #{tpu_custom_call.1} parent=0
    _
  %s12 = ssub.s32 1, %s10
  %s13 = scalar_select 0, %s12, %s10
  %v14 = vstv %s8
  %15 = vst [vmem:[#allocation2] sm:$0x1] %v14
  $region1: #{tpu_custom_call.1} parent=0
    #allocation3 [shape = 'u8[262144]{0}', space=vmem, size = 0x40000, scoped, tag = 'input window, operand 3, single buffered']
    #allocation4 [shape = 's32[1]{0}', space=sflag, size = 0x4, scoped, tag = 'scoped memory for tpu_custom_call.1']
    #allocation5 [shape = 's32[1]{0}', space=sflag, size = 0x4, scoped, tag = 'scoped memory for tpu_custom_call.1']
    #allocation6 [shape = 'u8[512]{0}', space=vmem, size = 0x400, scoped, tag = 'output window, operand 0, single buffered']
    %16 = vsyncpa [#allocation4], 0
    %17 = vsyncpa [#allocation5], 0
    // Predicated region
    $region2: #{tpu_custom_call.1} parent=1 // pred_check
      _
    $region3: #{tpu_custom_call.1} parent=1 // pred_check_branch
      %19 = sbr.rel (0) target = $region5
    $region4: #{tpu_custom_call.1} parent=1 // pred_region
      _
    $region5: #{tpu_custom_call.1} parent=1 // pred_fallthru
      _
    // Predicated region
    $region6: #{tpu_custom_call.1} parent=1 // pred_check
      _
    $region7: #{tpu_custom_call.1} parent=1 // pred_check_branch
      %21 = sbr.rel (0) target = $region9
    $region8: #{tpu_custom_call.1} parent=1 // pred_region
      _
    $region9: #{tpu_custom_call.1} parent=1 // pred_fallthru
      _
    // Predicated region
    $region10: #{tpu_custom_call.1} parent=1 // pred_check
      _
    $region11: #{tpu_custom_call.1} parent=1 // pred_check_branch
      %23 = sbr.rel (0) target = $region13
    $region12: #{tpu_custom_call.1} parent=1 // pred_region
      _
    $region13: #{tpu_custom_call.1} parent=1 // pred_fallthru
      _
    // Predicated region
    $region14: #{tpu_custom_call.1} parent=1 // pred_check
      _
    $region15: #{tpu_custom_call.1} parent=1 // pred_check_branch
      %25 = sbr.rel (0) target = $region17
    $region16: #{tpu_custom_call.1} parent=1 // pred_region
      %27 = vsyncadd [#allocation4], 0
      %s28 = sshll.u32 %s3, 4
      %s29 = int_to_ptr.hbm [resolvable:$true] %s28
      %s30 = sshll.u32 [#allocation3], 4
      %s31 = int_to_ptr.vmem [resolvable:$true] %s30
      %36 = dma.hbm_to_vmem [thread:$0]  %s29, 8192, %s31, [#allocation4], 128, 128, 8
    $region17: #{tpu_custom_call.1} parent=1 // pred_fallthru
      _
    // Predicated region
    $region18: #{tpu_custom_call.1} parent=1 // pred_check
      _
    $region19: #{tpu_custom_call.1} parent=1 // pred_check_branch
      %38 = sbr.rel (0) target = $region21
    $region20: #{tpu_custom_call.1} parent=1 // pred_region
      _
    $region21: #{tpu_custom_call.1} parent=1 // pred_fallthru
      _
    // Predicated region
    $region22: #{tpu_custom_call.1} parent=1 // pred_check
      _
    $region23: #{tpu_custom_call.1} parent=1 // pred_check_branch
      %40 = sbr.rel (0) target = $region25
    $region24: #{tpu_custom_call.1} parent=1 // pred_region
      _
    $region25: #{tpu_custom_call.1} parent=1 // pred_fallthru
      _
    // Predicated region
    $region26: #{tpu_custom_call.1} parent=1 // pred_check
      _
    $region27: #{tpu_custom_call.1} parent=1 // pred_check_branch
      %42 = sbr.rel (0) target = $region29
    $region28: #{tpu_custom_call.1} parent=1 // pred_region
      _
    $region29: #{tpu_custom_call.1} parent=1 // pred_fallthru
      _
    // Predicated region
    $region30: #{tpu_custom_call.1} parent=1 // pred_check
      _
    $region31: #{tpu_custom_call.1} parent=1 // pred_check_branch
      %44 = sbr.rel (0) target = $region33
    $region32: #{tpu_custom_call.1} parent=1 // pred_region
      _
    $region33: #{tpu_custom_call.1} parent=1 // pred_fallthru
      _
    // Predicated region
    $region34: #{tpu_custom_call.1} parent=1 // pred_check
      _
    $region35: #{tpu_custom_call.1} parent=1 // pred_check_branch
      %46 = sbr.rel (0) target = $region37
    $region36: #{tpu_custom_call.1} parent=1 // pred_region
      _
    $region37: #{tpu_custom_call.1} parent=1 // pred_fallthru
      _
    // Predicated region
    $region38: #{tpu_custom_call.1} parent=1 // pred_check
      _
    $region39: #{tpu_custom_call.1} parent=1 // pred_check_branch
      %48 = sbr.rel (0) target = $region41
    $region40: #{tpu_custom_call.1} parent=1 // pred_region
      %50 = dma.done [#allocation4], 8192
    $region41: #{tpu_custom_call.1} parent=1 // pred_fallthru
      _
    %v52 = vld [vmem:[%s0] sm:$0xff]
    %v53 = vpack.c.bf16 %v52, %v52
    %v54 = vld [vmem:[%s1] sm:$0xff]
    %v55 = vld [vmem:[%s1 + $0x8] sm:$0xff]
    %v56 = vld [vmem:[%s1 + $0x10] sm:$0x77]
    %v57 = vld [vmem:[%s1 + $0x18] sm:$0x77]
    %v58 = vld [vmem:[%s2] sm:$0xf]
    %v60 = vperm.slane %v58, 0
    %v61 = vperm.slane %v58, 1
    %v62 = vperm.slane %v58, 2
    %v63 = vperm.slane %v58, 3
    %v72 = vunpack.c.l.b16 %v54
    %v73 = vunpack.c.h.b16 %v54
    %v74 = vunpack.c.l.b16 %v55
    %v75 = vunpack.c.h.b16 %v55
    %v76 = vunpack.c.l.b16 %v56
    %v77 = vunpack.c.h.b16 %v56
    %v78 = vunpack.c.l.b16 %v57
    %v79 = vunpack.c.h.b16 %v57
    %v80 = vpack.c.b16 %v76, %v72
    %v81 = vpack.c.b16 %v77, %v73
    %v82 = vpack.c.b16 %v78, %v74
    %v83 = vpack.c.b16 %v79, %v75
    %vm84 = vcmask 113664
    %v86 = vsel %vm84, %v53, 0
    %vm88 = vcmask 1046528
    %v90 = vsel %vm88, %v80, 0
    %v93 = vsel %vm88, %v81, 0
    %v96 = vsel %vm88, %v82, 0
    %v99 = vsel %vm88, %v83, 0
    %101 = vmatpush.bf16.msra.mxu0 0
    %102 = vmatpush.bf16.msra.mxu0 0
    %103 = vmatpush.bf16.msra.mxu0 0
    %104 = vmatpush.bf16.msra.mxu0 0
    %105 = vmatpush.bf16.msra.mxu0 0
    %106 = vmatpush.bf16.msra.mxu0 0
    %107 = vmatpush.bf16.msra.mxu0 0
    %108 = vmatpush.bf16.msra.mxu0 %v90
    %109 = vmatmul.bf16.gmra.mxu0 %v86
    %v110 = vpop.f32.mrf.mxu0
    %v111 = vadd.f32 %v60, %v110
    %v112 = vpop.f32.mrf.mxu0
    %113 = vdwg.mxu0
    %114 = vmatpush.bf16.msra.mxu0 0
    %115 = vmatpush.bf16.msra.mxu0 0
    %116 = vmatpush.bf16.msra.mxu0 0
    %117 = vmatpush.bf16.msra.mxu0 0
    %118 = vmatpush.bf16.msra.mxu0 0
    %119 = vmatpush.bf16.msra.mxu0 0
    %120 = vmatpush.bf16.msra.mxu0 0
    %121 = vmatpush.bf16.msra.mxu0 %v93
    %122 = vmatmul.bf16.gmra.mxu0 %v86
    %v123 = vpop.f32.mrf.mxu0
    %v124 = vadd.f32 %v61, %v123
    %v125 = vpop.f32.mrf.mxu0
    %126 = vdwg.mxu0
    %127 = vmatpush.bf16.msra.mxu0 0
    %128 = vmatpush.bf16.msra.mxu0 0
    %129 = vmatpush.bf16.msra.mxu0 0
    %130 = vmatpush.bf16.msra.mxu0 0
    %131 = vmatpush.bf16.msra.mxu0 0
    %132 = vmatpush.bf16.msra.mxu0 0
    %133 = vmatpush.bf16.msra.mxu0 0
    %134 = vmatpush.bf16.msra.mxu0 %v96
    %135 = vmatmul.bf16.gmra.mxu0 %v86
    %v136 = vpop.f32.mrf.mxu0
    %v137 = vadd.f32 %v62, %v136
    %v138 = vpop.f32.mrf.mxu0
    %139 = vdwg.mxu0
    %140 = vmatpush.bf16.msra.mxu0 0
    %141 = vmatpush.bf16.msra.mxu0 0
    %142 = vmatpush.bf16.msra.mxu0 0
    %143 = vmatpush.bf16.msra.mxu0 0
    %144 = vmatpush.bf16.msra.mxu0 0
    %145 = vmatpush.bf16.msra.mxu0 0
    %146 = vmatpush.bf16.msra.mxu0 0
    %147 = vmatpush.bf16.msra.mxu0 %v99
    %148 = vmatmul.bf16.gmra.mxu0 %v86
    %v149 = vpop.f32.mrf.mxu0
    %v150 = vadd.f32 %v63, %v149
    %v151 = vpop.f32.mrf.mxu0
    %152 = vdwg.mxu0
    %v153 = vmax.f32 %v111, 0.0
    %v154 = vmax.f32 %v124, 0.0
    %v155 = vmax.f32 %v137, 0.0
    %v156 = vmax.f32 %v150, 0.0
    %v157 = vpack.c.bf16 %v153, %v153
    %v158 = vpack.c.bf16 %v154, %v154
    %v159 = vpack.c.bf16 %v155, %v155
    %v160 = vpack.c.bf16 %v156, %v156
    %v161 = vld [vmem:[#allocation3] sm:$0xff]
    %v162 = vld [vmem:[#allocation3 + $0x8] sm:$0xff]
    %v163 = vld [vmem:[#allocation3 + $0x10] sm:$0xff]
    %v164 = vld [vmem:[#allocation3 + $0x18] sm:$0xff]
    %v165 = vld [vmem:[#allocation3 + $0x20] sm:$0xff]
    %v166 = vld [vmem:[#allocation3 + $0x28] sm:$0xff]
    %v167 = vld [vmem:[#allocation3 + $0x30] sm:$0xff]
    %v168 = vld [vmem:[#allocation3 + $0x38] sm:$0xff]
    %v169 = vld [vmem:[#allocation3 + $0x40] sm:$0xff]
    %v170 = vld [vmem:[#allocation3 + $0x48] sm:$0xff]
    %v171 = vld [vmem:[#allocation3 + $0x50] sm:$0xff]
    %v172 = vld [vmem:[#allocation3 + $0x58] sm:$0xff]
    %v173 = vld [vmem:[#allocation3 + $0x60] sm:$0xff]
    %v174 = vld [vmem:[#allocation3 + $0x68] sm:$0xff]
    %v175 = vld [vmem:[#allocation3 + $0x70] sm:$0xff]
    %v176 = vld [vmem:[#allocation3 + $0x78] sm:$0xff]
    %v177 = vld [vmem:[#allocation3 + $0x80] sm:$0xff]
    %v178 = vld [vmem:[#allocation3 + $0x88] sm:$0xff]
    %v179 = vld [vmem:[#allocation3 + $0x90] sm:$0xff]
    %v180 = vld [vmem:[#allocation3 + $0x98] sm:$0xff]
    %v181 = vld [vmem:[#allocation3 + $0xa0] sm:$0xff]
    %v182 = vld [vmem:[#allocation3 + $0xa8] sm:$0xff]
    %v183 = vld [vmem:[#allocation3 + $0xb0] sm:$0xff]
    %v184 = vld [vmem:[#allocation3 + $0xb8] sm:$0xff]
    %v185 = vld [vmem:[#allocation3 + $0xc0] sm:$0xff]
    %v186 = vld [vmem:[#allocation3 + $0xc8] sm:$0xff]
    %v187 = vld [vmem:[#allocation3 + $0xd0] sm:$0xff]
    %v188 = vld [vmem:[#allocation3 + $0xd8] sm:$0xff]
    %v189 = vld [vmem:[#allocation3 + $0xe0] sm:$0xff]
    %v190 = vld [vmem:[#allocation3 + $0xe8] sm:$0xff]
    %v191 = vld [vmem:[#allocation3 + $0xf0] sm:$0xff]
    %v192 = vld [vmem:[#allocation3 + $0xf8] sm:$0xff]
    %v193 = vld [vmem:[#allocation3 + $0x100] sm:$0xff]
    %v194 = vld [vmem:[#allocation3 + $0x108] sm:$0xff]
    %v195 = vld [vmem:[#allocation3 + $0x110] sm:$0xff]
    %v196 = vld [vmem:[#allocation3 + $0x118] sm:$0xff]
    %v197 = vld [vmem:[#allocation3 + $0x120] sm:$0xff]
    %v198 = vld [vmem:[#allocation3 + $0x128] sm:$0xff]
    %v199 = vld [vmem:[#allocation3 + $0x130] sm:$0xff]
    %v200 = vld [vmem:[#allocation3 + $0x138] sm:$0xff]
    %v201 = vld [vmem:[#allocation3 + $0x140] sm:$0xff]
    %v202 = vld [vmem:[#allocation3 + $0x148] sm:$0xff]
    %v203 = vld [vmem:[#allocation3 + $0x150] sm:$0xff]
    %v204 = vld [vmem:[#allocation3 + $0x158] sm:$0xff]
    %v205 = vld [vmem:[#allocation3 + $0x160] sm:$0xff]
    %v206 = vld [vmem:[#allocation3 + $0x168] sm:$0xff]
    %v207 = vld [vmem:[#allocation3 + $0x170] sm:$0xff]
    %v208 = vld [vmem:[#allocation3 + $0x178] sm:$0xff]
    %v209 = vld [vmem:[#allocation3 + $0x180] sm:$0xff]
    %v210 = vld [vmem:[#allocation3 + $0x188] sm:$0xff]
    %v211 = vld [vmem:[#allocation3 + $0x190] sm:$0xff]
    %v212 = vld [vmem:[#allocation3 + $0x198] sm:$0xff]
    %v213 = vld [vmem:[#allocation3 + $0x1a0] sm:$0xff]
    %v214 = vld [vmem:[#allocation3 + $0x1a8] sm:$0xff]
    %v215 = vld [vmem:[#allocation3 + $0x1b0] sm:$0xff]
    %v216 = vld [vmem:[#allocation3 + $0x1b8] sm:$0xff]
    %v217 = vld [vmem:[#allocation3 + $0x1c0] sm:$0xff]
    %v218 = vld [vmem:[#allocation3 + $0x1c8] sm:$0xff]
    %v219 = vld [vmem:[#allocation3 + $0x1d0] sm:$0xff]
    %v220 = vld [vmem:[#allocation3 + $0x1d8] sm:$0xff]
    %v221 = vld [vmem:[#allocation3 + $0x1e0] sm:$0xff]
    %v222 = vld [vmem:[#allocation3 + $0x1e8] sm:$0xff]
    %v223 = vld [vmem:[#allocation3 + $0x1f0] sm:$0xff]
    %v224 = vld [vmem:[#allocation3 + $0x1f8] sm:$0xff]
    %v225 = vld [vmem:[%s4] sm:$0x3]
    %v227 = vperm.slane %v225, 0
    %v228 = vperm.slane %v225, 1
    %v295 = vunpack.c.l.b16 %v161
    %v296 = vunpack.c.h.b16 %v161
    %v297 = vunpack.c.l.b16 %v162
    %v298 = vunpack.c.h.b16 %v162
    %v299 = vunpack.c.l.b16 %v163
    %v300 = vunpack.c.h.b16 %v163
    %v301 = vunpack.c.l.b16 %v164
    %v302 = vunpack.c.h.b16 %v164
    %v303 = vunpack.c.l.b16 %v165
    %v304 = vunpack.c.h.b16 %v165
    %v305 = vunpack.c.l.b16 %v166
    %v306 = vunpack.c.h.b16 %v166
    %v307 = vunpack.c.l.b16 %v167
    %v308 = vunpack.c.h.b16 %v167
    %v309 = vunpack.c.l.b16 %v168
    %v310 = vunpack.c.h.b16 %v168
    %v311 = vunpack.c.l.b16 %v169
    %v312 = vunpack.c.h.b16 %v169
    %v313 = vunpack.c.l.b16 %v170
    %v314 = vunpack.c.h.b16 %v170
    %v315 = vunpack.c.l.b16 %v171
    %v316 = vunpack.c.h.b16 %v171
    %v317 = vunpack.c.l.b16 %v172
    %v318 = vunpack.c.h.b16 %v172
    %v319 = vunpack.c.l.b16 %v173
    %v320 = vunpack.c.h.b16 %v173
    %v321 = vunpack.c.l.b16 %v174
    %v322 = vunpack.c.h.b16 %v174
    %v323 = vunpack.c.l.b16 %v175
    %v324 = vunpack.c.h.b16 %v175
    %v325 = vunpack.c.l.b16 %v176
    %v326 = vunpack.c.h.b16 %v176
    %v327 = vunpack.c.l.b16 %v177
    %v328 = vunpack.c.h.b16 %v177
    %v329 = vunpack.c.l.b16 %v178
    %v330 = vunpack.c.h.b16 %v178
    %v331 = vunpack.c.l.b16 %v179
    %v332 = vunpack.c.h.b16 %v179
    %v333 = vunpack.c.l.b16 %v180
    %v334 = vunpack.c.h.b16 %v180
    %v335 = vunpack.c.l.b16 %v181
    %v336 = vunpack.c.h.b16 %v181
    %v337 = vunpack.c.l.b16 %v182
    %v338 = vunpack.c.h.b16 %v182
    %v339 = vunpack.c.l.b16 %v183
    %v340 = vunpack.c.h.b16 %v183
    %v341 = vunpack.c.l.b16 %v184
    %v342 = vunpack.c.h.b16 %v184
    %v343 = vunpack.c.l.b16 %v185
    %v344 = vunpack.c.h.b16 %v185
    %v345 = vunpack.c.l.b16 %v186
    %v346 = vunpack.c.h.b16 %v186
    %v347 = vunpack.c.l.b16 %v187
    %v348 = vunpack.c.h.b16 %v187
    %v349 = vunpack.c.l.b16 %v188
    %v350 = vunpack.c.h.b16 %v188
    %v351 = vunpack.c.l.b16 %v189
    %v352 = vunpack.c.h.b16 %v189
    %v353 = vunpack.c.l.b16 %v190
    %v354 = vunpack.c.h.b16 %v190
    %v355 = vunpack.c.l.b16 %v191
    %v356 = vunpack.c.h.b16 %v191
    %v357 = vunpack.c.l.b16 %v192
    %v358 = vunpack.c.h.b16 %v192
    %v359 = vunpack.c.l.b16 %v193
    %v360 = vunpack.c.h.b16 %v193
    %v361 = vunpack.c.l.b16 %v194
    %v362 = vunpack.c.h.b16 %v194
    %v363 = vunpack.c.l.b16 %v195
    %v364 = vunpack.c.h.b16 %v195
    %v365 = vunpack.c.l.b16 %v196
    %v366 = vunpack.c.h.b16 %v196
    %v367 = vunpack.c.l.b16 %v197
    %v368 = vunpack.c.h.b16 %v197
    %v369 = vunpack.c.l.b16 %v198
    %v370 = vunpack.c.h.b16 %v198
    %v371 = vunpack.c.l.b16 %v199
    %v372 = vunpack.c.h.b16 %v199
    %v373 = vunpack.c.l.b16 %v200
    %v374 = vunpack.c.h.b16 %v200
    %v375 = vunpack.c.l.b16 %v201
    %v376 = vunpack.c.h.b16 %v201
    %v377 = vunpack.c.l.b16 %v202
    %v378 = vunpack.c.h.b16 %v202
    %v379 = vunpack.c.l.b16 %v203
    %v380 = vunpack.c.h.b16 %v203
    %v381 = vunpack.c.l.b16 %v204
    %v382 = vunpack.c.h.b16 %v204
    %v383 = vunpack.c.l.b16 %v205
    %v384 = vunpack.c.h.b16 %v205
    %v385 = vunpack.c.l.b16 %v206
    %v386 = vunpack.c.h.b16 %v206
    %v387 = vunpack.c.l.b16 %v207
    %v388 = vunpack.c.h.b16 %v207
    %v389 = vunpack.c.l.b16 %v208
    %v390 = vunpack.c.h.b16 %v208
    %v391 = vunpack.c.l.b16 %v209
    %v392 = vunpack.c.h.b16 %v209
    %v393 = vunpack.c.l.b16 %v210
    %v394 = vunpack.c.h.b16 %v210
    %v395 = vunpack.c.l.b16 %v211
    %v396 = vunpack.c.h.b16 %v211
    %v397 = vunpack.c.l.b16 %v212
    %v398 = vunpack.c.h.b16 %v212
    %v399 = vunpack.c.l.b16 %v213
    %v400 = vunpack.c.h.b16 %v213
    %v401 = vunpack.c.l.b16 %v214
    %v402 = vunpack.c.h.b16 %v214
    %v403 = vunpack.c.l.b16 %v215
    %v404 = vunpack.c.h.b16 %v215
    %v405 = vunpack.c.l.b16 %v216
    %v406 = vunpack.c.h.b16 %v216
    %v407 = vunpack.c.l.b16 %v217
    %v408 = vunpack.c.h.b16 %v217
    %v409 = vunpack.c.l.b16 %v218
    %v410 = vunpack.c.h.b16 %v218
    %v411 = vunpack.c.l.b16 %v219
    %v412 = vunpack.c.h.b16 %v219
    %v413 = vunpack.c.l.b16 %v220
    %v414 = vunpack.c.h.b16 %v220
    %v415 = vunpack.c.l.b16 %v221
    %v416 = vunpack.c.h.b16 %v221
    %v417 = vunpack.c.l.b16 %v222
    %v418 = vunpack.c.h.b16 %v222
    %v419 = vunpack.c.l.b16 %v223
    %v420 = vunpack.c.h.b16 %v223
    %v421 = vunpack.c.l.b16 %v224
    %v422 = vunpack.c.h.b16 %v224
    %v423 = vpack.c.b16 %v297, %v295
    %v424 = vpack.c.b16 %v298, %v296
    %v425 = vpack.c.b16 %v301, %v299
    %v426 = vpack.c.b16 %v302, %v300
    %v427 = vpack.c.b16 %v305, %v303
    %v428 = vpack.c.b16 %v306, %v304
    %v429 = vpack.c.b16 %v309, %v307
    %v430 = vpack.c.b16 %v310, %v308
    %v431 = vpack.c.b16 %v313, %v311
    %v432 = vpack.c.b16 %v314, %v312
    %v433 = vpack.c.b16 %v317, %v315
    %v434 = vpack.c.b16 %v318, %v316
    %v435 = vpack.c.b16 %v321, %v319
    %v436 = vpack.c.b16 %v322, %v320
    %v437 = vpack.c.b16 %v325, %v323
    %v438 = vpack.c.b16 %v326, %v324
    %v439 = vpack.c.b16 %v329, %v327
    %v440 = vpack.c.b16 %v330, %v328
    %v441 = vpack.c.b16 %v333, %v331
    %v442 = vpack.c.b16 %v334, %v332
    %v443 = vpack.c.b16 %v337, %v335
    %v444 = vpack.c.b16 %v338, %v336
    %v445 = vpack.c.b16 %v341, %v339
    %v446 = vpack.c.b16 %v342, %v340
    %v447 = vpack.c.b16 %v345, %v343
    %v448 = vpack.c.b16 %v346, %v344
    %v449 = vpack.c.b16 %v349, %v347
    %v450 = vpack.c.b16 %v350, %v348
    %v451 = vpack.c.b16 %v353, %v351
    %v452 = vpack.c.b16 %v354, %v352
    %v453 = vpack.c.b16 %v357, %v355
    %v454 = vpack.c.b16 %v358, %v356
    %v455 = vpack.c.b16 %v361, %v359
    %v456 = vpack.c.b16 %v362, %v360
    %v457 = vpack.c.b16 %v365, %v363
    %v458 = vpack.c.b16 %v366, %v364
    %v459 = vpack.c.b16 %v369, %v367
    %v460 = vpack.c.b16 %v370, %v368
    %v461 = vpack.c.b16 %v373, %v371
    %v462 = vpack.c.b16 %v374, %v372
    %v463 = vpack.c.b16 %v377, %v375
    %v464 = vpack.c.b16 %v378, %v376
    %v465 = vpack.c.b16 %v381, %v379
    %v466 = vpack.c.b16 %v382, %v380
    %v467 = vpack.c.b16 %v385, %v383
    %v468 = vpack.c.b16 %v386, %v384
    %v469 = vpack.c.b16 %v389, %v387
    %v470 = vpack.c.b16 %v390, %v388
    %v471 = vpack.c.b16 %v393, %v391
    %v472 = vpack.c.b16 %v394, %v392
    %v473 = vpack.c.b16 %v397, %v395
    %v474 = vpack.c.b16 %v398, %v396
    %v475 = vpack.c.b16 %v401, %v399
    %v476 = vpack.c.b16 %v402, %v400
    %v477 = vpack.c.b16 %v405, %v403
    %v478 = vpack.c.b16 %v406, %v404
    %v479 = vpack.c.b16 %v409, %v407
    %v480 = vpack.c.b16 %v410, %v408
    %v481 = vpack.c.b16 %v413, %v411
    %v482 = vpack.c.b16 %v414, %v412
    %v483 = vpack.c.b16 %v417, %v415
    %v484 = vpack.c.b16 %v418, %v416
    %v485 = vpack.c.b16 %v421, %v419
    %v486 = vpack.c.b16 %v422, %v420
    %551 = vmatpush.bf16.msra.mxu0 %v437
    %552 = vmatpush.bf16.msra.mxu0 %v435
    %553 = vmatpush.bf16.msra.mxu0 %v433
    %554 = vmatpush.bf16.msra.mxu0 %v431
    %555 = vmatpush.bf16.msra.mxu0 %v429
    %556 = vmatpush.bf16.msra.mxu0 %v427
    %557 = vmatpush.bf16.msra.mxu0 %v425
    %558 = vmatpush.bf16.msra.mxu0 %v423
    %559 = vmatmul.bf16.gmra.mxu0 %v157
    %v560 = vpop.f32.mrf.mxu0
    %v561 = vadd.f32 %v227, %v560
    %v562 = vpop.f32.mrf.mxu0
    %563 = vdwg.mxu0
    %564 = vmatpush.bf16.msra.mxu0 %v453
    %565 = vmatpush.bf16.msra.mxu0 %v451
    %566 = vmatpush.bf16.msra.mxu0 %v449
    %567 = vmatpush.bf16.msra.mxu0 %v447
    %568 = vmatpush.bf16.msra.mxu0 %v445
    %569 = vmatpush.bf16.msra.mxu0 %v443
    %570 = vmatpush.bf16.msra.mxu0 %v441
    %571 = vmatpush.bf16.msra.mxu0 %v439
    %572 = vmatmul.bf16.gmra.mxu0 %v158
    %v573 = vpop.f32.mrf.mxu0
    %v574 = vadd.f32 %v561, %v573
    %v575 = vpop.f32.mrf.mxu0
    %576 = vdwg.mxu0
    %577 = vmatpush.bf16.msra.mxu0 %v469
    %578 = vmatpush.bf16.msra.mxu0 %v467
    %579 = vmatpush.bf16.msra.mxu0 %v465
    %580 = vmatpush.bf16.msra.mxu0 %v463
    %581 = vmatpush.bf16.msra.mxu0 %v461
    %582 = vmatpush.bf16.msra.mxu0 %v459
    %583 = vmatpush.bf16.msra.mxu0 %v457
    %584 = vmatpush.bf16.msra.mxu0 %v455
    %585 = vmatmul.bf16.gmra.mxu0 %v159
    %v586 = vpop.f32.mrf.mxu0
    %v587 = vadd.f32 %v574, %v586
    %v588 = vpop.f32.mrf.mxu0
    %589 = vdwg.mxu0
    %590 = vmatpush.bf16.msra.mxu0 %v485
    %591 = vmatpush.bf16.msra.mxu0 %v483
    %592 = vmatpush.bf16.msra.mxu0 %v481
    %593 = vmatpush.bf16.msra.mxu0 %v479
    %594 = vmatpush.bf16.msra.mxu0 %v477
    %595 = vmatpush.bf16.msra.mxu0 %v475
    %596 = vmatpush.bf16.msra.mxu0 %v473
    %597 = vmatpush.bf16.msra.mxu0 %v471
    %598 = vmatmul.bf16.gmra.mxu0 %v160
    %v599 = vpop.f32.mrf.mxu0
    %v600 = vadd.f32 %v587, %v599
    %v601 = vpop.f32.mrf.mxu0
    %602 = vdwg.mxu0
    %603 = vmatpush.bf16.msra.mxu0 %v438
    %604 = vmatpush.bf16.msra.mxu0 %v436
    %605 = vmatpush.bf16.msra.mxu0 %v434
    %606 = vmatpush.bf16.msra.mxu0 %v432
    %607 = vmatpush.bf16.msra.mxu0 %v430
    %608 = vmatpush.bf16.msra.mxu0 %v428
    %609 = vmatpush.bf16.msra.mxu0 %v426
    %610 = vmatpush.bf16.msra.mxu0 %v424
    %611 = vmatmul.bf16.gmra.mxu0 %v157
    %v612 = vpop.f32.mrf.mxu0
    %v613 = vadd.f32 %v228, %v612
    %v614 = vpop.f32.mrf.mxu0
    %615 = vdwg.mxu0
    %616 = vmatpush.bf16.msra.mxu0 %v454
    %617 = vmatpush.bf16.msra.mxu0 %v452
    %618 = vmatpush.bf16.msra.mxu0 %v450
    %619 = vmatpush.bf16.msra.mxu0 %v448
    %620 = vmatpush.bf16.msra.mxu0 %v446
    %621 = vmatpush.bf16.msra.mxu0 %v444
    %622 = vmatpush.bf16.msra.mxu0 %v442
    %623 = vmatpush.bf16.msra.mxu0 %v440
    %624 = vmatmul.bf16.gmra.mxu0 %v158
    %v625 = vpop.f32.mrf.mxu0
    %v626 = vadd.f32 %v613, %v625
    %v627 = vpop.f32.mrf.mxu0
    %628 = vdwg.mxu0
    %629 = vmatpush.bf16.msra.mxu0 %v470
    %630 = vmatpush.bf16.msra.mxu0 %v468
    %631 = vmatpush.bf16.msra.mxu0 %v466
    %632 = vmatpush.bf16.msra.mxu0 %v464
    %633 = vmatpush.bf16.msra.mxu0 %v462
    %634 = vmatpush.bf16.msra.mxu0 %v460
    %635 = vmatpush.bf16.msra.mxu0 %v458
    %636 = vmatpush.bf16.msra.mxu0 %v456
    %637 = vmatmul.bf16.gmra.mxu0 %v159
    %v638 = vpop.f32.mrf.mxu0
    %v639 = vadd.f32 %v626, %v638
    %v640 = vpop.f32.mrf.mxu0
    %641 = vdwg.mxu0
    %642 = vmatpush.bf16.msra.mxu0 %v486
    %643 = vmatpush.bf16.msra.mxu0 %v484
    %644 = vmatpush.bf16.msra.mxu0 %v482
    %645 = vmatpush.bf16.msra.mxu0 %v480
    %646 = vmatpush.bf16.msra.mxu0 %v478
    %647 = vmatpush.bf16.msra.mxu0 %v476
    %648 = vmatpush.bf16.msra.mxu0 %v474
    %649 = vmatpush.bf16.msra.mxu0 %v472
    %650 = vmatmul.bf16.gmra.mxu0 %v160
    %v651 = vpop.f32.mrf.mxu0
    %v652 = vadd.f32 %v639, %v651
    %v653 = vpop.f32.mrf.mxu0
    %654 = vdwg.mxu0
    %v655 = vmax.f32 %v600, 0.0
    %v656 = vmax.f32 %v652, 0.0
    %v657 = vpack.c.bf16 %v655, %v655
    %v658 = vpack.c.bf16 %v656, %v656
    %v659 = vld [vmem:[%s5] sm:$0xf]
    %v660 = vld [vmem:[%s5 + $0x4] sm:$0xf]
    %v661 = vld [vmem:[%s5 + $0x8] sm:$0xf]
    %v662 = vld [vmem:[%s5 + $0xc] sm:$0xf]
    %v663 = vld [vmem:[%s5 + $0x10] sm:$0xf]
    %v664 = vld [vmem:[%s5 + $0x14] sm:$0xf]
    %v665 = vld [vmem:[%s5 + $0x18] sm:$0xf]
    %v666 = vld [vmem:[%s5 + $0x1c] sm:$0xf]
    %v667 = vld [vmem:[%s5 + $0x20] sm:$0xf]
    %v668 = vld [vmem:[%s5 + $0x24] sm:$0xf]
    %v669 = vld [vmem:[%s5 + $0x28] sm:$0xf]
    %v670 = vld [vmem:[%s5 + $0x2c] sm:$0xf]
    %v671 = vld [vmem:[%s5 + $0x30] sm:$0xf]
    %v672 = vld [vmem:[%s5 + $0x34] sm:$0xf]
    %v673 = vld [vmem:[%s5 + $0x38] sm:$0xf]
    %v674 = vld [vmem:[%s5 + $0x3c] sm:$0xf]
    %v675 = vld [vmem:[%s5 + $0x40] sm:$0xf]
    %v676 = vld [vmem:[%s5 + $0x44] sm:$0xf]
    %v677 = vld [vmem:[%s5 + $0x48] sm:$0xf]
    %v678 = vld [vmem:[%s5 + $0x4c] sm:$0xf]
    %v679 = vld [vmem:[%s5 + $0x50] sm:$0xf]
    %v680 = vld [vmem:[%s5 + $0x54] sm:$0xf]
    %v681 = vld [vmem:[%s5 + $0x58] sm:$0xf]
    %v682 = vld [vmem:[%s5 + $0x5c] sm:$0xf]
    %v683 = vld [vmem:[%s5 + $0x60] sm:$0xf]
    %v684 = vld [vmem:[%s5 + $0x64] sm:$0xf]
    %v685 = vld [vmem:[%s5 + $0x68] sm:$0xf]
    %v686 = vld [vmem:[%s5 + $0x6c] sm:$0xf]
    %v687 = vld [vmem:[%s5 + $0x70] sm:$0xf]
    %v688 = vld [vmem:[%s5 + $0x74] sm:$0xf]
    %v689 = vld [vmem:[%s5 + $0x78] sm:$0xf]
    %v690 = vld [vmem:[%s5 + $0x7c] sm:$0xf]
    %v691 = vld [vmem:[%s6] sm:$0x1]
    %v693 = vperm.slane %v691, 0
    %v727 = vunpack.c.l.b16 %v659
    %v728 = vunpack.c.l.b16 %v660
    %v729 = vunpack.c.l.b16 %v661
    %v730 = vunpack.c.l.b16 %v662
    %v731 = vunpack.c.l.b16 %v663
    %v732 = vunpack.c.l.b16 %v664
    %v733 = vunpack.c.l.b16 %v665
    %v734 = vunpack.c.l.b16 %v666
    %v735 = vunpack.c.l.b16 %v667
    %v736 = vunpack.c.l.b16 %v668
    %v737 = vunpack.c.l.b16 %v669
    %v738 = vunpack.c.l.b16 %v670
    %v739 = vunpack.c.l.b16 %v671
    %v740 = vunpack.c.l.b16 %v672
    %v741 = vunpack.c.l.b16 %v673
    %v742 = vunpack.c.l.b16 %v674
    %v743 = vunpack.c.l.b16 %v675
    %v744 = vunpack.c.l.b16 %v676
    %v745 = vunpack.c.l.b16 %v677
    %v746 = vunpack.c.l.b16 %v678
    %v747 = vunpack.c.l.b16 %v679
    %v748 = vunpack.c.l.b16 %v680
    %v749 = vunpack.c.l.b16 %v681
    %v750 = vunpack.c.l.b16 %v682
    %v751 = vunpack.c.l.b16 %v683
    %v752 = vunpack.c.l.b16 %v684
    %v753 = vunpack.c.l.b16 %v685
    %v754 = vunpack.c.l.b16 %v686
    %v755 = vunpack.c.l.b16 %v687
    %v756 = vunpack.c.l.b16 %v688
    %v757 = vunpack.c.l.b16 %v689
    %v758 = vunpack.c.l.b16 %v690
    %v759 = vpack.c.b16 %v728, %v727
    %v760 = vpack.c.b16 %v730, %v729
    %v761 = vpack.c.b16 %v732, %v731
    %v762 = vpack.c.b16 %v734, %v733
    %v763 = vpack.c.b16 %v736, %v735
    %v764 = vpack.c.b16 %v738, %v737
    %v765 = vpack.c.b16 %v740, %v739
    %v766 = vpack.c.b16 %v742, %v741
    %v767 = vpack.c.b16 %v744, %v743
    %v768 = vpack.c.b16 %v746, %v745
    %v769 = vpack.c.b16 %v748, %v747
    %v770 = vpack.c.b16 %v750, %v749
    %v771 = vpack.c.b16 %v752, %v751
    %v772 = vpack.c.b16 %v754, %v753
    %v773 = vpack.c.b16 %v756, %v755
    %v774 = vpack.c.b16 %v758, %v757
    %791 = vmatpush.bf16.msra.mxu0 %v766
    %792 = vmatpush.bf16.msra.mxu0 %v765
    %793 = vmatpush.bf16.msra.mxu0 %v764
    %794 = vmatpush.bf16.msra.mxu0 %v763
    %795 = vmatpush.bf16.msra.mxu0 %v762
    %796 = vmatpush.bf16.msra.mxu0 %v761
    %797 = vmatpush.bf16.msra.mxu0 %v760
    %798 = vmatpush.bf16.msra.mxu0 %v759
    %799 = vmatmul.bf16.gmra.mxu0 %v657
    %v800 = vpop.f32.mrf.mxu0
    %v801 = vadd.f32 %v693, %v800
    %v802 = vpop.f32.mrf.mxu0
    %803 = vdwg.mxu0
    %804 = vmatpush.bf16.msra.mxu0 %v774
    %805 = vmatpush.bf16.msra.mxu0 %v773
    %806 = vmatpush.bf16.msra.mxu0 %v772
    %807 = vmatpush.bf16.msra.mxu0 %v771
    %808 = vmatpush.bf16.msra.mxu0 %v770
    %809 = vmatpush.bf16.msra.mxu0 %v769
    %810 = vmatpush.bf16.msra.mxu0 %v768
    %811 = vmatpush.bf16.msra.mxu0 %v767
    %812 = vmatmul.bf16.gmra.mxu0 %v658
    %v813 = vpop.f32.mrf.mxu0
    %v814 = vadd.f32 %v801, %v813
    %v815 = vpop.f32.mrf.mxu0
    %816 = vdwg.mxu0
    %v817 = vmax.f32 %v814, 0.0
    %v818 = vld [vmem:[%s7] sm:$0x1]
    %v820 = vperm.slane %v818, 0
    %v822 = vmul.f32 %v817, %v820
    %vm823 = vcmask 490496
    %v824 = vsel %vm823, %v822, 0.0
    %825 = vadd.xlane.f32.xlu0 %v824
    %v826 = vpop.xlane.xlu0 %825
    %v827 = vld [vmem:[#allocation2] sm:$0x1]
    %v829 = vperm.slane %v827, 0
    %v831 = vadd.f32 %v826, %v829
    %v832 = vxor.u32 %v831, 2147483648
    %v833 = vmul.f32 %v832, 1.442695
    %v834 = vpow.pop %v833
    %v835 = vadd.f32 %v834, 1.0
    %v836 = vrcp.pop %v835
    %v837 = vmul.f32 %v835, %v836
    %v838 = vsub.f32 1.0, %v837
    %v839 = vmul.f32 %v836, %v838
    %v840 = vadd.f32 %v836, %v839
    %vm841 = vweird.f32 %v835
    %vm842 = vweird.f32 %v836
    %vm843 = vmor %vm841, %vm842
    %v844 = vsel %vm843, %v836, %v840
    %v845 = vand.u32 2147483647, %v835
    %vm846 = vcmp.eq.f32.partialorder %v845, 8.507059e+37
    %v847 = vand.u32 %v835, 2147483648
    %v848 = vor.u32 1.1754944e-38, %v847
    %v849 = vsel %vm846, %v848, %v844
    %v850 = vmul.f32 1.0, %v849
    %851 = vxpose.xlu0.b32.start [1/16] %v850, 128
    %852 = vxpose.xlu0.b32.cont [2/16] 0.0, 128
    %853 = vxpose.xlu0.b32.cont [3/16] 0.0, 128
    %854 = vxpose.xlu0.b32.cont [4/16] 0.0, 128
    %855 = vxpose.xlu0.b32.cont [5/16] 0.0, 128
    %856 = vxpose.xlu0.b32.cont [6/16] 0.0, 128
    %857 = vxpose.xlu0.b32.cont [7/16] 0.0, 128
    %858 = vxpose.xlu0.b32.cont [8/16] 0.0, 128
    %859 = vxpose.xlu0.b32.cont [9/16] 0.0, 128
    %860 = vxpose.xlu0.b32.cont [10/16] 0.0, 128
    %861 = vxpose.xlu0.b32.cont [11/16] 0.0, 128
    %862 = vxpose.xlu0.b32.cont [12/16] 0.0, 128
    %863 = vxpose.xlu0.b32.cont [13/16] 0.0, 128
    %864 = vxpose.xlu0.b32.cont [14/16] 0.0, 128
    %865 = vxpose.xlu0.b32.cont [15/16] 0.0, 128
    %866 = vxpose.xlu0.b32.end [16/16] 0.0, 128
    %v867 = vpop.trf.xlu0
    %v868 = vpop.trf.xlu0
    %v869 = vpop.trf.xlu0
    %v870 = vpop.trf.xlu0
    %v871 = vpop.trf.xlu0
    %v872 = vpop.trf.xlu0
    %v873 = vpop.trf.xlu0
    %v874 = vpop.trf.xlu0
    %v875 = vpop.trf.xlu0
    %v876 = vpop.trf.xlu0
    %v877 = vpop.trf.xlu0
    %v878 = vpop.trf.xlu0
    %v879 = vpop.trf.xlu0
    %v880 = vpop.trf.xlu0
    %v881 = vpop.trf.xlu0
    %v882 = vpop.trf.xlu0
    %vm883 = vcmask 57344
    %884 = vst.msk [vmem:[#allocation6] sm:$0x1] %vm883, %v867
    // Predicated region
    $region42: #{tpu_custom_call.1} parent=1 // pred_check
      _
    $region43: #{tpu_custom_call.1} parent=1 // pred_check_branch
      %886 = sbr.rel (0) target = $region45
    $region44: #{tpu_custom_call.1} parent=1 // pred_region
      %888 = vsyncadd [#allocation5], 0
      %s890 = sshll.u32 [#allocation6], 4
      %s891 = int_to_ptr.vmem [resolvable:$true] %s890
      %s892 = sshll.u32 %s9, 4
      %s893 = int_to_ptr.hbm [resolvable:$true] %s892
      %895 = dma.vmem_to_hbm [thread:$0]  %s891, 16, %s893, [#allocation5]
    $region45: #{tpu_custom_call.1} parent=1 // pred_fallthru
      _
    // Predicated region
    $region46: #{tpu_custom_call.1} parent=1 // pred_check
      _
    $region47: #{tpu_custom_call.1} parent=1 // pred_check_branch
      %897 = sbr.rel (0) target = $region49
    $region48: #{tpu_custom_call.1} parent=1 // pred_region
      %899 = dma.done [#allocation5], 16
    $region49: #{tpu_custom_call.1} parent=1 // pred_fallthru
      _
    %900 = vsyncpa [#allocation4], 1
    %901 = vsyncpa [#allocation5], 1

</llo_original>
